<compile_context>
chip_gen: v7x
topology: tpu7x:2x2x1
jax: 0.10.0
libtpu: 0.0.40
codegen_flags: <defaults>
</compile_context>

<pallas_src>
import functools

import jax
import jax.numpy as jnp
from jax import lax
from jax.experimental import pallas as pl
from jax.experimental.pallas import tpu as pltpu

NUM_KERNELS = 6


# ---------------------------------------------------------------------------
# Pallas kernel: one grid step == one batch element.
#   x_ref   : (1, Cin_pad, H*W)   flattened NCHW input tile (lane-dense)
#   w_ref   : (Cout, K)           merged taps, 1/n_convs folded in, K=T*Cin_pad
#   b_ref   : (Cout, 1)           mean bias (f32)
#   out_ref : (1, Cout, H*W)      flattened NCHW output tile (lane-dense store)
# `offsets` are the static (dh, dw) stencil offsets of the merged taps.
# ---------------------------------------------------------------------------
def _inception_kernel(x_ref, w_ref, b_ref, out_ref, *, offsets, H, W,
                      compute_dtype):
    HW = H * W
    x = x_ref[0].astype(compute_dtype)                      # (Cin_pad, HW)

    # Lane geometry generated in-kernel (no HBM mask traffic).
    lane = lax.broadcasted_iota(jnp.int32, (1, HW), 1)      # flat pixel index
    col = lane % W                                          # w coordinate

    pieces = []
    for (dh, dw) in offsets:
        if dh == 0 and dw == 0:
            pieces.append(x)                                # centre tap: no shift
            continue
        s = dh * W + dw
        # shifted[ci, p] = x[ci, (p + s) mod HW]  (XLU lane rotation)
        shifted = jnp.roll(x, -s, axis=-1)
        # Valid iff 0 <= w+dw < W (no row wrap) and 0 <= h+dh < H (no image
        # wrap); given the column check, the row check is equivalent to the
        # flat-index bound 0 <= p + dh*W < HW.
        valid = ((col + dw >= 0) & (col + dw < W) &
                 (lane + dh * W >= 0) & (lane + dh * W < HW))
        pieces.append(shifted * valid.astype(compute_dtype))

    # Sublane-aligned stack (each piece has Cin_pad rows, a multiple of the
    # sublane pack) -> (K, HW), then a single MXU matmul, spatial axis on lanes.
    im2col = jnp.concatenate(pieces, axis=0)
    acc = jnp.dot(w_ref[...], im2col, preferred_element_type=jnp.float32)
    out_ref[0] = (acc + b_ref[...]).astype(out_ref.dtype)


# ---------------------------------------------------------------------------
# Wrapper: NCHW in / NCHW out, PyTorch conv weight layout (Cout, Cin, kH, kW).
# ---------------------------------------------------------------------------
def inception_block_v2(x_nchw, conv_weights, conv_biases, *, compute_dtype=None):
    N, Cin, H, W = x_nchw.shape
    Cout = conv_weights[0].shape[0]
    n_convs = len(conv_weights)
    HW = H * W

    if compute_dtype is None:
        compute_dtype = x_nchw.dtype          # keep f32 by default (tight check)
    compute_dtype = jnp.dtype(compute_dtype)  # set jnp.bfloat16 on v6e/v7x

    # Merge every (kh, kw) tap of every conv by its relative spatial offset and
    # fold in the 1/n_convs averaging (31 taps -> 13 offsets for num_kernels=6).
    merged = {}
    for wk in conv_weights:
        _, _, kH, kW = wk.shape
        padH, padW = (kH - 1) // 2, (kW - 1) // 2
        for kh in range(kH):
            for kw in range(kW):
                key = (kh - padH, kw - padW)               # (dh, dw)
                tap = wk[:, :, kh, kw]                     # (Cout, Cin)
                merged[key] = tap if key not in merged else merged[key] + tap
    offsets = tuple(sorted(merged.keys()))
    T = len(offsets)

    # Pad each tap's channel block to the sublane pack so the in-kernel
    # concatenate along sublanes is tile-aligned (8 rows f32 / 16 rows bf16).
    sub_pack = max(8, 32 // compute_dtype.itemsize)
    cin_pad = ((Cin + sub_pack - 1) // sub_pack) * sub_pack
    K = T * cin_pad

    scale = 1.0 / n_convs
    w_blocks = []
    for off in offsets:
        blk = merged[off].astype(jnp.float32) * scale      # (Cout, Cin)
        if cin_pad > Cin:
            blk = jnp.pad(blk, ((0, 0), (0, cin_pad - Cin)))
        w_blocks.append(blk)
    w2d = jnp.concatenate(w_blocks, axis=1).astype(compute_dtype)   # (Cout, K)
    bias = (sum(conv_biases).astype(jnp.float32) * scale).reshape(Cout, 1)

    # Free metadata reshape (contiguous dims); channel pad only if needed.
    x_flat = x_nchw.reshape(N, Cin, HW)
    if cin_pad > Cin:
        x_flat = jnp.pad(x_flat, ((0, 0), (0, cin_pad - Cin), (0, 0)))

    kern = functools.partial(_inception_kernel, offsets=offsets, H=H, W=W,
                             compute_dtype=compute_dtype)

    # TODO(synk): for very large H*W (> ~1-2M lanes per image) add an HW-tile
    # grid axis with halo handling; whole-image-per-step is used here.
    out_flat = pl.pallas_call(
        kern,
        out_shape=jax.ShapeDtypeStruct((N, Cout, HW), x_nchw.dtype),
        grid_spec=pltpu.PrefetchScalarGridSpec(
            num_scalar_prefetch=0,
            grid=(N,),
            in_specs=[
                pl.BlockSpec((1, cin_pad, HW), lambda n: (n, 0, 0)),
                pl.BlockSpec((Cout, K), lambda n: (0, 0)),     # grid-invariant
                pl.BlockSpec((Cout, 1), lambda n: (0, 0)),     # grid-invariant
            ],
            out_specs=pl.BlockSpec((1, Cout, HW), lambda n: (n, 0, 0)),
        ),
        compiler_params=pltpu.CompilerParams(
            dimension_semantics=("parallel",),
            vmem_limit_bytes=64 * 1024 * 1024),
    )(x_flat, w2d, bias)

    return out_flat.reshape(N, Cout, H, W)                  # free reshape back


# ---------------------------------------------------------------------------
# Deterministic parameter construction (mirrors Inception_Block_V2.__init__
# with kaiming_normal_(mode='fan_out', nonlinearity='relu') and zero bias).
# ---------------------------------------------------------------------------
def make_params(key, in_channels, out_channels, num_kernels=NUM_KERNELS):
    shapes = []
    for i in range(num_kernels // 2):
        shapes.append((out_channels, in_channels, 1, 2 * i + 3))  # [1, 2i+3]
        shapes.append((out_channels, in_channels, 2 * i + 3, 1))  # [2i+3, 1]
    shapes.append((out_channels, in_channels, 1, 1))               # 1x1
    weights, biases = [], []
    for s in shapes:
        key, sub = jax.random.split(key)
        fan_out = s[0] * s[2] * s[3]
        std = (2.0 / fan_out) ** 0.5
        weights.append(std * jax.random.normal(sub, s, dtype=jnp.float32))
        biases.append(jnp.zeros((s[0],), dtype=jnp.float32))
    return weights, biases


# Pure-JAX reference (lax convs) for correctness check.
def reference(x, conv_weights, conv_biases):
    outs = []
    for wk, bk in zip(conv_weights, conv_biases):
        kH, kW = wk.shape[2], wk.shape[3]
        padH, padW = (kH - 1) // 2, (kW - 1) // 2
        o = lax.conv_general_dilated(
            x, wk, window_strides=(1, 1),
            padding=((padH, padH), (padW, padW)),
            dimension_numbers=('NCHW', 'OIHW', 'NCHW'))
        outs.append(o + bk.reshape(1, -1, 1, 1))
    return jnp.mean(jnp.stack(outs, axis=-1), axis=-1)


if __name__ == "__main__":
    key = jax.random.PRNGKey(0)
    key, kx = jax.random.split(key)

    N, Cin, Cout, H, W = 2, 4, 8, 16, 16
    x = jax.random.normal(kx, (N, Cin, H, W), dtype=jnp.float32)
    weights, biases = make_params(key, Cin, Cout, NUM_KERNELS)

    out = inception_block_v2(x, weights, biases)
    out = jax.block_until_ready(out)

    ref = reference(x, weights, biases)
    assert out.shape == (N, Cout, H, W)
    err = float(jnp.max(jnp.abs(out - ref)))
    assert jnp.allclose(out, ref, atol=1e-4, rtol=1e-4), err

    print("KERNEL_OK")
</pallas_src>

<mosaic_0001>
module attributes {stable_mosaic.version = 11 : i64} {
  func.func @_inception_kernel(%arg0: i32, %arg1: memref<1x8x256xf32, #tpu.memory_space<vmem>>, %arg2: memref<8x104xf32, #tpu.memory_space<vmem>>, %arg3: memref<8x1xf32, #tpu.memory_space<vmem>>, %arg4: memref<1x8x256xf32, #tpu.memory_space<vmem>>) attributes {dimension_semantics = [#tpu.dimension_semantics<parallel>], iteration_bounds = array<i64: 2>, scalar_prefetch = 0 : i64, scratch_operands = 0 : i64, tpu.core_type = #tpu.core_type<tc>, window_params = [{transform_indices = @transform_0, window_bounds = array<i64: 1, 8, 256>}, {pipeline_mode = #tpu.pipeline_mode<synchronous>, transform_indices = @transform_1, window_bounds = array<i64: 8, 104>}, {pipeline_mode = #tpu.pipeline_mode<synchronous>, transform_indices = @transform_2, window_bounds = array<i64: 8, 1>}, {transform_indices = @transform_3, window_bounds = array<i64: 1, 8, 256>}]} {
    %c0 = arith.constant 0 : index
    %c0_0 = arith.constant 0 : index
    %c0_1 = arith.constant 0 : index
    %0 = vector.load %arg1[%c0, %c0_0, %c0_1] : memref<1x8x256xf32, #tpu.memory_space<vmem>>, vector<1x8x256xf32>
    %1 = vector.shape_cast %0 : vector<1x8x256xf32> to vector<8x256xf32>
    %2 = tpu.iota {dimensions = array<i32: 1>} : vector<1x256xi32>
    %c16_i32 = arith.constant 16 : i32
    %c0_i32 = arith.constant 0 : i32
    %3 = arith.cmpi eq, %c16_i32, %c0_i32 : i32
    %c1_i32 = arith.constant 1 : i32
    %4 = arith.select %3, %c1_i32, %c16_i32 : i32
    %5 = vector.broadcast %4 : i32 to vector<1x256xi32>
    %6 = arith.remsi %2, %5 : vector<1x256xi32>
    %c0_i32_2 = arith.constant 0 : i32
    %7 = vector.broadcast %c0_i32_2 : i32 to vector<1x256xi32>
    %8 = arith.cmpi ne, %6, %7 : vector<1x256xi32>
    %c0_i32_3 = arith.constant 0 : i32
    %9 = vector.broadcast %c0_i32_3 : i32 to vector<1x256xi32>
    %10 = arith.cmpi slt, %6, %9 : vector<1x256xi32>
    %c0_i32_4 = arith.constant 0 : i32
    %11 = arith.cmpi slt, %4, %c0_i32_4 : i32
    %12 = vector.broadcast %11 : i1 to vector<1x256xi1>
    %13 = vector.broadcast %12 : vector<1x256xi1> to vector<1x256xi1>
    %14 = arith.xori %10, %13 : vector<1x256xi1>
    %15 = arith.andi %14, %8 : vector<1x256xi1>
    %16 = vector.broadcast %4 : i32 to vector<1x256xi32>
    %17 = arith.addi %6, %16 : vector<1x256xi32>
    %18 = arith.select %15, %17, %6 : vector<1x256xi1>, vector<1x256xi32>
    %19 = vector.extract_strided_slice %1 {offsets = [0, 208], sizes = [8, 48], strides = [1, 1]} : vector<8x256xf32> to vector<8x48xf32>
    %20 = vector.extract_strided_slice %1 {offsets = [0, 0], sizes = [8, 208], strides = [1, 1]} : vector<8x256xf32> to vector<8x208xf32>
    %21 = tpu.concatenate %19, %20 in 1 : vector<8x48xf32>, vector<8x208xf32> -> vector<8x256xf32>
    %c0_i32_5 = arith.constant 0 : i32
    %22 = vector.broadcast %c0_i32_5 : i32 to vector<1x256xi32>
    %23 = arith.addi %18, %22 : vector<1x256xi32>
    %c0_i32_6 = arith.constant 0 : i32
    %24 = vector.broadcast %c0_i32_6 : i32 to vector<1x256xi32>
    %25 = arith.cmpi sge, %23, %24 : vector<1x256xi32>
    %c0_i32_7 = arith.constant 0 : i32
    %26 = vector.broadcast %c0_i32_7 : i32 to vector<1x256xi32>
    %27 = arith.addi %18, %26 : vector<1x256xi32>
    %c16_i32_8 = arith.constant 16 : i32
    %28 = vector.broadcast %c16_i32_8 : i32 to vector<1x256xi32>
    %29 = arith.cmpi slt, %27, %28 : vector<1x256xi32>
    %30 = arith.andi %25, %29 : vector<1x256xi1>
    %c-48_i32 = arith.constant -48 : i32
    %31 = vector.broadcast %c-48_i32 : i32 to vector<1x256xi32>
    %32 = arith.addi %2, %31 : vector<1x256xi32>
    %c0_i32_9 = arith.constant 0 : i32
    %33 = vector.broadcast %c0_i32_9 : i32 to vector<1x256xi32>
    %34 = arith.cmpi sge, %32, %33 : vector<1x256xi32>
    %35 = arith.andi %30, %34 : vector<1x256xi1>
    %c-48_i32_10 = arith.constant -48 : i32
    %36 = vector.broadcast %c-48_i32_10 : i32 to vector<1x256xi32>
    %37 = arith.addi %2, %36 : vector<1x256xi32>
    %c256_i32 = arith.constant 256 : i32
    %38 = vector.broadcast %c256_i32 : i32 to vector<1x256xi32>
    %39 = arith.cmpi slt, %37, %38 : vector<1x256xi32>
    %40 = arith.andi %35, %39 : vector<1x256xi1>
    %41 = arith.extui %40 : vector<1x256xi1> to vector<1x256xi32>
    %42 = arith.sitofp %41 : vector<1x256xi32> to vector<1x256xf32>
    %43 = vector.broadcast %42 : vector<1x256xf32> to vector<8x256xf32>
    %44 = arith.mulf %21, %43 : vector<8x256xf32>
    %45 = vector.extract_strided_slice %1 {offsets = [0, 224], sizes = [8, 32], strides = [1, 1]} : vector<8x256xf32> to vector<8x32xf32>
    %46 = vector.extract_strided_slice %1 {offsets = [0, 0], sizes = [8, 224], strides = [1, 1]} : vector<8x256xf32> to vector<8x224xf32>
    %47 = tpu.concatenate %45, %46 in 1 : vector<8x32xf32>, vector<8x224xf32> -> vector<8x256xf32>
    %c0_i32_11 = arith.constant 0 : i32
    %48 = vector.broadcast %c0_i32_11 : i32 to vector<1x256xi32>
    %49 = arith.addi %18, %48 : vector<1x256xi32>
    %c0_i32_12 = arith.constant 0 : i32
    %50 = vector.broadcast %c0_i32_12 : i32 to vector<1x256xi32>
    %51 = arith.cmpi sge, %49, %50 : vector<1x256xi32>
    %c0_i32_13 = arith.constant 0 : i32
    %52 = vector.broadcast %c0_i32_13 : i32 to vector<1x256xi32>
    %53 = arith.addi %18, %52 : vector<1x256xi32>
    %c16_i32_14 = arith.constant 16 : i32
    %54 = vector.broadcast %c16_i32_14 : i32 to vector<1x256xi32>
    %55 = arith.cmpi slt, %53, %54 : vector<1x256xi32>
    %56 = arith.andi %51, %55 : vector<1x256xi1>
    %c-32_i32 = arith.constant -32 : i32
    %57 = vector.broadcast %c-32_i32 : i32 to vector<1x256xi32>
    %58 = arith.addi %2, %57 : vector<1x256xi32>
    %c0_i32_15 = arith.constant 0 : i32
    %59 = vector.broadcast %c0_i32_15 : i32 to vector<1x256xi32>
    %60 = arith.cmpi sge, %58, %59 : vector<1x256xi32>
    %61 = arith.andi %56, %60 : vector<1x256xi1>
    %c-32_i32_16 = arith.constant -32 : i32
    %62 = vector.broadcast %c-32_i32_16 : i32 to vector<1x256xi32>
    %63 = arith.addi %2, %62 : vector<1x256xi32>
    %c256_i32_17 = arith.constant 256 : i32
    %64 = vector.broadcast %c256_i32_17 : i32 to vector<1x256xi32>
    %65 = arith.cmpi slt, %63, %64 : vector<1x256xi32>
    %66 = arith.andi %61, %65 : vector<1x256xi1>
    %67 = arith.extui %66 : vector<1x256xi1> to vector<1x256xi32>
    %68 = arith.sitofp %67 : vector<1x256xi32> to vector<1x256xf32>
    %69 = vector.broadcast %68 : vector<1x256xf32> to vector<8x256xf32>
    %70 = arith.mulf %47, %69 : vector<8x256xf32>
    %71 = vector.extract_strided_slice %1 {offsets = [0, 240], sizes = [8, 16], strides = [1, 1]} : vector<8x256xf32> to vector<8x16xf32>
    %72 = vector.extract_strided_slice %1 {offsets = [0, 0], sizes = [8, 240], strides = [1, 1]} : vector<8x256xf32> to vector<8x240xf32>
    %73 = tpu.concatenate %71, %72 in 1 : vector<8x16xf32>, vector<8x240xf32> -> vector<8x256xf32>
    %c0_i32_18 = arith.constant 0 : i32
    %74 = vector.broadcast %c0_i32_18 : i32 to vector<1x256xi32>
    %75 = arith.addi %18, %74 : vector<1x256xi32>
    %c0_i32_19 = arith.constant 0 : i32
    %76 = vector.broadcast %c0_i32_19 : i32 to vector<1x256xi32>
    %77 = arith.cmpi sge, %75, %76 : vector<1x256xi32>
    %c0_i32_20 = arith.constant 0 : i32
    %78 = vector.broadcast %c0_i32_20 : i32 to vector<1x256xi32>
    %79 = arith.addi %18, %78 : vector<1x256xi32>
    %c16_i32_21 = arith.constant 16 : i32
    %80 = vector.broadcast %c16_i32_21 : i32 to vector<1x256xi32>
    %81 = arith.cmpi slt, %79, %80 : vector<1x256xi32>
    %82 = arith.andi %77, %81 : vector<1x256xi1>
    %c-16_i32 = arith.constant -16 : i32
    %83 = vector.broadcast %c-16_i32 : i32 to vector<1x256xi32>
    %84 = arith.addi %2, %83 : vector<1x256xi32>
    %c0_i32_22 = arith.constant 0 : i32
    %85 = vector.broadcast %c0_i32_22 : i32 to vector<1x256xi32>
    %86 = arith.cmpi sge, %84, %85 : vector<1x256xi32>
    %87 = arith.andi %82, %86 : vector<1x256xi1>
    %c-16_i32_23 = arith.constant -16 : i32
    %88 = vector.broadcast %c-16_i32_23 : i32 to vector<1x256xi32>
    %89 = arith.addi %2, %88 : vector<1x256xi32>
    %c256_i32_24 = arith.constant 256 : i32
    %90 = vector.broadcast %c256_i32_24 : i32 to vector<1x256xi32>
    %91 = arith.cmpi slt, %89, %90 : vector<1x256xi32>
    %92 = arith.andi %87, %91 : vector<1x256xi1>
    %93 = arith.extui %92 : vector<1x256xi1> to vector<1x256xi32>
    %94 = arith.sitofp %93 : vector<1x256xi32> to vector<1x256xf32>
    %95 = vector.broadcast %94 : vector<1x256xf32> to vector<8x256xf32>
    %96 = arith.mulf %73, %95 : vector<8x256xf32>
    %97 = vector.extract_strided_slice %1 {offsets = [0, 253], sizes = [8, 3], strides = [1, 1]} : vector<8x256xf32> to vector<8x3xf32>
    %98 = vector.extract_strided_slice %1 {offsets = [0, 0], sizes = [8, 253], strides = [1, 1]} : vector<8x256xf32> to vector<8x253xf32>
    %99 = tpu.concatenate %97, %98 in 1 : vector<8x3xf32>, vector<8x253xf32> -> vector<8x256xf32>
    %c-3_i32 = arith.constant -3 : i32
    %100 = vector.broadcast %c-3_i32 : i32 to vector<1x256xi32>
    %101 = arith.addi %18, %100 : vector<1x256xi32>
    %c0_i32_25 = arith.constant 0 : i32
    %102 = vector.broadcast %c0_i32_25 : i32 to vector<1x256xi32>
    %103 = arith.cmpi sge, %101, %102 : vector<1x256xi32>
    %c-3_i32_26 = arith.constant -3 : i32
    %104 = vector.broadcast %c-3_i32_26 : i32 to vector<1x256xi32>
    %105 = arith.addi %18, %104 : vector<1x256xi32>
    %c16_i32_27 = arith.constant 16 : i32
    %106 = vector.broadcast %c16_i32_27 : i32 to vector<1x256xi32>
    %107 = arith.cmpi slt, %105, %106 : vector<1x256xi32>
    %108 = arith.andi %103, %107 : vector<1x256xi1>
    %c0_i32_28 = arith.constant 0 : i32
    %109 = vector.broadcast %c0_i32_28 : i32 to vector<1x256xi32>
    %110 = arith.addi %2, %109 : vector<1x256xi32>
    %c0_i32_29 = arith.constant 0 : i32
    %111 = vector.broadcast %c0_i32_29 : i32 to vector<1x256xi32>
    %112 = arith.cmpi sge, %110, %111 : vector<1x256xi32>
    %113 = arith.andi %108, %112 : vector<1x256xi1>
    %c0_i32_30 = arith.constant 0 : i32
    %114 = vector.broadcast %c0_i32_30 : i32 to vector<1x256xi32>
    %115 = arith.addi %2, %114 : vector<1x256xi32>
    %c256_i32_31 = arith.constant 256 : i32
    %116 = vector.broadcast %c256_i32_31 : i32 to vector<1x256xi32>
    %117 = arith.cmpi slt, %115, %116 : vector<1x256xi32>
    %118 = arith.andi %113, %117 : vector<1x256xi1>
    %119 = arith.extui %118 : vector<1x256xi1> to vector<1x256xi32>
    %120 = arith.sitofp %119 : vector<1x256xi32> to vector<1x256xf32>
    %121 = vector.broadcast %120 : vector<1x256xf32> to vector<8x256xf32>
    %122 = arith.mulf %99, %121 : vector<8x256xf32>
    %123 = vector.extract_strided_slice %1 {offsets = [0, 254], sizes = [8, 2], strides = [1, 1]} : vector<8x256xf32> to vector<8x2xf32>
    %124 = vector.extract_strided_slice %1 {offsets = [0, 0], sizes = [8, 254], strides = [1, 1]} : vector<8x256xf32> to vector<8x254xf32>
    %125 = tpu.concatenate %123, %124 in 1 : vector<8x2xf32>, vector<8x254xf32> -> vector<8x256xf32>
    %c-2_i32 = arith.constant -2 : i32
    %126 = vector.broadcast %c-2_i32 : i32 to vector<1x256xi32>
    %127 = arith.addi %18, %126 : vector<1x256xi32>
    %c0_i32_32 = arith.constant 0 : i32
    %128 = vector.broadcast %c0_i32_32 : i32 to vector<1x256xi32>
    %129 = arith.cmpi sge, %127, %128 : vector<1x256xi32>
    %c-2_i32_33 = arith.constant -2 : i32
    %130 = vector.broadcast %c-2_i32_33 : i32 to vector<1x256xi32>
    %131 = arith.addi %18, %130 : vector<1x256xi32>
    %c16_i32_34 = arith.constant 16 : i32
    %132 = vector.broadcast %c16_i32_34 : i32 to vector<1x256xi32>
    %133 = arith.cmpi slt, %131, %132 : vector<1x256xi32>
    %134 = arith.andi %129, %133 : vector<1x256xi1>
    %c0_i32_35 = arith.constant 0 : i32
    %135 = vector.broadcast %c0_i32_35 : i32 to vector<1x256xi32>
    %136 = arith.addi %2, %135 : vector<1x256xi32>
    %c0_i32_36 = arith.constant 0 : i32
    %137 = vector.broadcast %c0_i32_36 : i32 to vector<1x256xi32>
    %138 = arith.cmpi sge, %136, %137 : vector<1x256xi32>
    %139 = arith.andi %134, %138 : vector<1x256xi1>
    %c0_i32_37 = arith.constant 0 : i32
    %140 = vector.broadcast %c0_i32_37 : i32 to vector<1x256xi32>
    %141 = arith.addi %2, %140 : vector<1x256xi32>
    %c256_i32_38 = arith.constant 256 : i32
    %142 = vector.broadcast %c256_i32_38 : i32 to vector<1x256xi32>
    %143 = arith.cmpi slt, %141, %142 : vector<1x256xi32>
    %144 = arith.andi %139, %143 : vector<1x256xi1>
    %145 = arith.extui %144 : vector<1x256xi1> to vector<1x256xi32>
    %146 = arith.sitofp %145 : vector<1x256xi32> to vector<1x256xf32>
    %147 = vector.broadcast %146 : vector<1x256xf32> to vector<8x256xf32>
    %148 = arith.mulf %125, %147 : vector<8x256xf32>
    %149 = vector.extract_strided_slice %1 {offsets = [0, 255], sizes = [8, 1], strides = [1, 1]} : vector<8x256xf32> to vector<8x1xf32>
    %150 = vector.extract_strided_slice %1 {offsets = [0, 0], sizes = [8, 255], strides = [1, 1]} : vector<8x256xf32> to vector<8x255xf32>
    %151 = tpu.concatenate %149, %150 in 1 : vector<8x1xf32>, vector<8x255xf32> -> vector<8x256xf32>
    %c-1_i32 = arith.constant -1 : i32
    %152 = vector.broadcast %c-1_i32 : i32 to vector<1x256xi32>
    %153 = arith.addi %18, %152 : vector<1x256xi32>
    %c0_i32_39 = arith.constant 0 : i32
    %154 = vector.broadcast %c0_i32_39 : i32 to vector<1x256xi32>
    %155 = arith.cmpi sge, %153, %154 : vector<1x256xi32>
    %c-1_i32_40 = arith.constant -1 : i32
    %156 = vector.broadcast %c-1_i32_40 : i32 to vector<1x256xi32>
    %157 = arith.addi %18, %156 : vector<1x256xi32>
    %c16_i32_41 = arith.constant 16 : i32
    %158 = vector.broadcast %c16_i32_41 : i32 to vector<1x256xi32>
    %159 = arith.cmpi slt, %157, %158 : vector<1x256xi32>
    %160 = arith.andi %155, %159 : vector<1x256xi1>
    %c0_i32_42 = arith.constant 0 : i32
    %161 = vector.broadcast %c0_i32_42 : i32 to vector<1x256xi32>
    %162 = arith.addi %2, %161 : vector<1x256xi32>
    %c0_i32_43 = arith.constant 0 : i32
    %163 = vector.broadcast %c0_i32_43 : i32 to vector<1x256xi32>
    %164 = arith.cmpi sge, %162, %163 : vector<1x256xi32>
    %165 = arith.andi %160, %164 : vector<1x256xi1>
    %c0_i32_44 = arith.constant 0 : i32
    %166 = vector.broadcast %c0_i32_44 : i32 to vector<1x256xi32>
    %167 = arith.addi %2, %166 : vector<1x256xi32>
    %c256_i32_45 = arith.constant 256 : i32
    %168 = vector.broadcast %c256_i32_45 : i32 to vector<1x256xi32>
    %169 = arith.cmpi slt, %167, %168 : vector<1x256xi32>
    %170 = arith.andi %165, %169 : vector<1x256xi1>
    %171 = arith.extui %170 : vector<1x256xi1> to vector<1x256xi32>
    %172 = arith.sitofp %171 : vector<1x256xi32> to vector<1x256xf32>
    %173 = vector.broadcast %172 : vector<1x256xf32> to vector<8x256xf32>
    %174 = arith.mulf %151, %173 : vector<8x256xf32>
    %175 = vector.extract_strided_slice %1 {offsets = [0, 1], sizes = [8, 255], strides = [1, 1]} : vector<8x256xf32> to vector<8x255xf32>
    %176 = vector.extract_strided_slice %1 {offsets = [0, 0], sizes = [8, 1], strides = [1, 1]} : vector<8x256xf32> to vector<8x1xf32>
    %177 = tpu.concatenate %175, %176 in 1 : vector<8x255xf32>, vector<8x1xf32> -> vector<8x256xf32>
    %c1_i32_46 = arith.constant 1 : i32
    %178 = vector.broadcast %c1_i32_46 : i32 to vector<1x256xi32>
    %179 = arith.addi %18, %178 : vector<1x256xi32>
    %c0_i32_47 = arith.constant 0 : i32
    %180 = vector.broadcast %c0_i32_47 : i32 to vector<1x256xi32>
    %181 = arith.cmpi sge, %179, %180 : vector<1x256xi32>
    %c1_i32_48 = arith.constant 1 : i32
    %182 = vector.broadcast %c1_i32_48 : i32 to vector<1x256xi32>
    %183 = arith.addi %18, %182 : vector<1x256xi32>
    %c16_i32_49 = arith.constant 16 : i32
    %184 = vector.broadcast %c16_i32_49 : i32 to vector<1x256xi32>
    %185 = arith.cmpi slt, %183, %184 : vector<1x256xi32>
    %186 = arith.andi %181, %185 : vector<1x256xi1>
    %c0_i32_50 = arith.constant 0 : i32
    %187 = vector.broadcast %c0_i32_50 : i32 to vector<1x256xi32>
    %188 = arith.addi %2, %187 : vector<1x256xi32>
    %c0_i32_51 = arith.constant 0 : i32
    %189 = vector.broadcast %c0_i32_51 : i32 to vector<1x256xi32>
    %190 = arith.cmpi sge, %188, %189 : vector<1x256xi32>
    %191 = arith.andi %186, %190 : vector<1x256xi1>
    %c0_i32_52 = arith.constant 0 : i32
    %192 = vector.broadcast %c0_i32_52 : i32 to vector<1x256xi32>
    %193 = arith.addi %2, %192 : vector<1x256xi32>
    %c256_i32_53 = arith.constant 256 : i32
    %194 = vector.broadcast %c256_i32_53 : i32 to vector<1x256xi32>
    %195 = arith.cmpi slt, %193, %194 : vector<1x256xi32>
    %196 = arith.andi %191, %195 : vector<1x256xi1>
    %197 = arith.extui %196 : vector<1x256xi1> to vector<1x256xi32>
    %198 = arith.sitofp %197 : vector<1x256xi32> to vector<1x256xf32>
    %199 = vector.broadcast %198 : vector<1x256xf32> to vector<8x256xf32>
    %200 = arith.mulf %177, %199 : vector<8x256xf32>
    %201 = vector.extract_strided_slice %1 {offsets = [0, 2], sizes = [8, 254], strides = [1, 1]} : vector<8x256xf32> to vector<8x254xf32>
    %202 = vector.extract_strided_slice %1 {offsets = [0, 0], sizes = [8, 2], strides = [1, 1]} : vector<8x256xf32> to vector<8x2xf32>
    %203 = tpu.concatenate %201, %202 in 1 : vector<8x254xf32>, vector<8x2xf32> -> vector<8x256xf32>
    %c2_i32 = arith.constant 2 : i32
    %204 = vector.broadcast %c2_i32 : i32 to vector<1x256xi32>
    %205 = arith.addi %18, %204 : vector<1x256xi32>
    %c0_i32_54 = arith.constant 0 : i32
    %206 = vector.broadcast %c0_i32_54 : i32 to vector<1x256xi32>
    %207 = arith.cmpi sge, %205, %206 : vector<1x256xi32>
    %c2_i32_55 = arith.constant 2 : i32
    %208 = vector.broadcast %c2_i32_55 : i32 to vector<1x256xi32>
    %209 = arith.addi %18, %208 : vector<1x256xi32>
    %c16_i32_56 = arith.constant 16 : i32
    %210 = vector.broadcast %c16_i32_56 : i32 to vector<1x256xi32>
    %211 = arith.cmpi slt, %209, %210 : vector<1x256xi32>
    %212 = arith.andi %207, %211 : vector<1x256xi1>
    %c0_i32_57 = arith.constant 0 : i32
    %213 = vector.broadcast %c0_i32_57 : i32 to vector<1x256xi32>
    %214 = arith.addi %2, %213 : vector<1x256xi32>
    %c0_i32_58 = arith.constant 0 : i32
    %215 = vector.broadcast %c0_i32_58 : i32 to vector<1x256xi32>
    %216 = arith.cmpi sge, %214, %215 : vector<1x256xi32>
    %217 = arith.andi %212, %216 : vector<1x256xi1>
    %c0_i32_59 = arith.constant 0 : i32
    %218 = vector.broadcast %c0_i32_59 : i32 to vector<1x256xi32>
    %219 = arith.addi %2, %218 : vector<1x256xi32>
    %c256_i32_60 = arith.constant 256 : i32
    %220 = vector.broadcast %c256_i32_60 : i32 to vector<1x256xi32>
    %221 = arith.cmpi slt, %219, %220 : vector<1x256xi32>
    %222 = arith.andi %217, %221 : vector<1x256xi1>
    %223 = arith.extui %222 : vector<1x256xi1> to vector<1x256xi32>
    %224 = arith.sitofp %223 : vector<1x256xi32> to vector<1x256xf32>
    %225 = vector.broadcast %224 : vector<1x256xf32> to vector<8x256xf32>
    %226 = arith.mulf %203, %225 : vector<8x256xf32>
    %227 = vector.extract_strided_slice %1 {offsets = [0, 3], sizes = [8, 253], strides = [1, 1]} : vector<8x256xf32> to vector<8x253xf32>
    %228 = vector.extract_strided_slice %1 {offsets = [0, 0], sizes = [8, 3], strides = [1, 1]} : vector<8x256xf32> to vector<8x3xf32>
    %229 = tpu.concatenate %227, %228 in 1 : vector<8x253xf32>, vector<8x3xf32> -> vector<8x256xf32>
    %c3_i32 = arith.constant 3 : i32
    %230 = vector.broadcast %c3_i32 : i32 to vector<1x256xi32>
    %231 = arith.addi %18, %230 : vector<1x256xi32>
    %c0_i32_61 = arith.constant 0 : i32
    %232 = vector.broadcast %c0_i32_61 : i32 to vector<1x256xi32>
    %233 = arith.cmpi sge, %231, %232 : vector<1x256xi32>
    %c3_i32_62 = arith.constant 3 : i32
    %234 = vector.broadcast %c3_i32_62 : i32 to vector<1x256xi32>
    %235 = arith.addi %18, %234 : vector<1x256xi32>
    %c16_i32_63 = arith.constant 16 : i32
    %236 = vector.broadcast %c16_i32_63 : i32 to vector<1x256xi32>
    %237 = arith.cmpi slt, %235, %236 : vector<1x256xi32>
    %238 = arith.andi %233, %237 : vector<1x256xi1>
    %c0_i32_64 = arith.constant 0 : i32
    %239 = vector.broadcast %c0_i32_64 : i32 to vector<1x256xi32>
    %240 = arith.addi %2, %239 : vector<1x256xi32>
    %c0_i32_65 = arith.constant 0 : i32
    %241 = vector.broadcast %c0_i32_65 : i32 to vector<1x256xi32>
    %242 = arith.cmpi sge, %240, %241 : vector<1x256xi32>
    %243 = arith.andi %238, %242 : vector<1x256xi1>
    %c0_i32_66 = arith.constant 0 : i32
    %244 = vector.broadcast %c0_i32_66 : i32 to vector<1x256xi32>
    %245 = arith.addi %2, %244 : vector<1x256xi32>
    %c256_i32_67 = arith.constant 256 : i32
    %246 = vector.broadcast %c256_i32_67 : i32 to vector<1x256xi32>
    %247 = arith.cmpi slt, %245, %246 : vector<1x256xi32>
    %248 = arith.andi %243, %247 : vector<1x256xi1>
    %249 = arith.extui %248 : vector<1x256xi1> to vector<1x256xi32>
    %250 = arith.sitofp %249 : vector<1x256xi32> to vector<1x256xf32>
    %251 = vector.broadcast %250 : vector<1x256xf32> to vector<8x256xf32>
    %252 = arith.mulf %229, %251 : vector<8x256xf32>
    %253 = vector.extract_strided_slice %1 {offsets = [0, 16], sizes = [8, 240], strides = [1, 1]} : vector<8x256xf32> to vector<8x240xf32>
    %254 = vector.extract_strided_slice %1 {offsets = [0, 0], sizes = [8, 16], strides = [1, 1]} : vector<8x256xf32> to vector<8x16xf32>
    %255 = tpu.concatenate %253, %254 in 1 : vector<8x240xf32>, vector<8x16xf32> -> vector<8x256xf32>
    %c0_i32_68 = arith.constant 0 : i32
    %256 = vector.broadcast %c0_i32_68 : i32 to vector<1x256xi32>
    %257 = arith.addi %18, %256 : vector<1x256xi32>
    %c0_i32_69 = arith.constant 0 : i32
    %258 = vector.broadcast %c0_i32_69 : i32 to vector<1x256xi32>
    %259 = arith.cmpi sge, %257, %258 : vector<1x256xi32>
    %c0_i32_70 = arith.constant 0 : i32
    %260 = vector.broadcast %c0_i32_70 : i32 to vector<1x256xi32>
    %261 = arith.addi %18, %260 : vector<1x256xi32>
    %c16_i32_71 = arith.constant 16 : i32
    %262 = vector.broadcast %c16_i32_71 : i32 to vector<1x256xi32>
    %263 = arith.cmpi slt, %261, %262 : vector<1x256xi32>
    %264 = arith.andi %259, %263 : vector<1x256xi1>
    %c16_i32_72 = arith.constant 16 : i32
    %265 = vector.broadcast %c16_i32_72 : i32 to vector<1x256xi32>
    %266 = arith.addi %2, %265 : vector<1x256xi32>
    %c0_i32_73 = arith.constant 0 : i32
    %267 = vector.broadcast %c0_i32_73 : i32 to vector<1x256xi32>
    %268 = arith.cmpi sge, %266, %267 : vector<1x256xi32>
    %269 = arith.andi %264, %268 : vector<1x256xi1>
    %c16_i32_74 = arith.constant 16 : i32
    %270 = vector.broadcast %c16_i32_74 : i32 to vector<1x256xi32>
    %271 = arith.addi %2, %270 : vector<1x256xi32>
    %c256_i32_75 = arith.constant 256 : i32
    %272 = vector.broadcast %c256_i32_75 : i32 to vector<1x256xi32>
    %273 = arith.cmpi slt, %271, %272 : vector<1x256xi32>
    %274 = arith.andi %269, %273 : vector<1x256xi1>
    %275 = arith.extui %274 : vector<1x256xi1> to vector<1x256xi32>
    %276 = arith.sitofp %275 : vector<1x256xi32> to vector<1x256xf32>
    %277 = vector.broadcast %276 : vector<1x256xf32> to vector<8x256xf32>
    %278 = arith.mulf %255, %277 : vector<8x256xf32>
    %279 = vector.extract_strided_slice %1 {offsets = [0, 32], sizes = [8, 224], strides = [1, 1]} : vector<8x256xf32> to vector<8x224xf32>
    %280 = vector.extract_strided_slice %1 {offsets = [0, 0], sizes = [8, 32], strides = [1, 1]} : vector<8x256xf32> to vector<8x32xf32>
    %281 = tpu.concatenate %279, %280 in 1 : vector<8x224xf32>, vector<8x32xf32> -> vector<8x256xf32>
    %c0_i32_76 = arith.constant 0 : i32
    %282 = vector.broadcast %c0_i32_76 : i32 to vector<1x256xi32>
    %283 = arith.addi %18, %282 : vector<1x256xi32>
    %c0_i32_77 = arith.constant 0 : i32
    %284 = vector.broadcast %c0_i32_77 : i32 to vector<1x256xi32>
    %285 = arith.cmpi sge, %283, %284 : vector<1x256xi32>
    %c0_i32_78 = arith.constant 0 : i32
    %286 = vector.broadcast %c0_i32_78 : i32 to vector<1x256xi32>
    %287 = arith.addi %18, %286 : vector<1x256xi32>
    %c16_i32_79 = arith.constant 16 : i32
    %288 = vector.broadcast %c16_i32_79 : i32 to vector<1x256xi32>
    %289 = arith.cmpi slt, %287, %288 : vector<1x256xi32>
    %290 = arith.andi %285, %289 : vector<1x256xi1>
    %c32_i32 = arith.constant 32 : i32
    %291 = vector.broadcast %c32_i32 : i32 to vector<1x256xi32>
    %292 = arith.addi %2, %291 : vector<1x256xi32>
    %c0_i32_80 = arith.constant 0 : i32
    %293 = vector.broadcast %c0_i32_80 : i32 to vector<1x256xi32>
    %294 = arith.cmpi sge, %292, %293 : vector<1x256xi32>
    %295 = arith.andi %290, %294 : vector<1x256xi1>
    %c32_i32_81 = arith.constant 32 : i32
    %296 = vector.broadcast %c32_i32_81 : i32 to vector<1x256xi32>
    %297 = arith.addi %2, %296 : vector<1x256xi32>
    %c256_i32_82 = arith.constant 256 : i32
    %298 = vector.broadcast %c256_i32_82 : i32 to vector<1x256xi32>
    %299 = arith.cmpi slt, %297, %298 : vector<1x256xi32>
    %300 = arith.andi %295, %299 : vector<1x256xi1>
    %301 = arith.extui %300 : vector<1x256xi1> to vector<1x256xi32>
    %302 = arith.sitofp %301 : vector<1x256xi32> to vector<1x256xf32>
    %303 = vector.broadcast %302 : vector<1x256xf32> to vector<8x256xf32>
    %304 = arith.mulf %281, %303 : vector<8x256xf32>
    %305 = vector.extract_strided_slice %1 {offsets = [0, 48], sizes = [8, 208], strides = [1, 1]} : vector<8x256xf32> to vector<8x208xf32>
    %306 = vector.extract_strided_slice %1 {offsets = [0, 0], sizes = [8, 48], strides = [1, 1]} : vector<8x256xf32> to vector<8x48xf32>
    %307 = tpu.concatenate %305, %306 in 1 : vector<8x208xf32>, vector<8x48xf32> -> vector<8x256xf32>
    %c0_i32_83 = arith.constant 0 : i32
    %308 = vector.broadcast %c0_i32_83 : i32 to vector<1x256xi32>
    %309 = arith.addi %18, %308 : vector<1x256xi32>
    %c0_i32_84 = arith.constant 0 : i32
    %310 = vector.broadcast %c0_i32_84 : i32 to vector<1x256xi32>
    %311 = arith.cmpi sge, %309, %310 : vector<1x256xi32>
    %c0_i32_85 = arith.constant 0 : i32
    %312 = vector.broadcast %c0_i32_85 : i32 to vector<1x256xi32>
    %313 = arith.addi %18, %312 : vector<1x256xi32>
    %c16_i32_86 = arith.constant 16 : i32
    %314 = vector.broadcast %c16_i32_86 : i32 to vector<1x256xi32>
    %315 = arith.cmpi slt, %313, %314 : vector<1x256xi32>
    %316 = arith.andi %311, %315 : vector<1x256xi1>
    %c48_i32 = arith.constant 48 : i32
    %317 = vector.broadcast %c48_i32 : i32 to vector<1x256xi32>
    %318 = arith.addi %2, %317 : vector<1x256xi32>
    %c0_i32_87 = arith.constant 0 : i32
    %319 = vector.broadcast %c0_i32_87 : i32 to vector<1x256xi32>
    %320 = arith.cmpi sge, %318, %319 : vector<1x256xi32>
    %321 = arith.andi %316, %320 : vector<1x256xi1>
    %c48_i32_88 = arith.constant 48 : i32
    %322 = vector.broadcast %c48_i32_88 : i32 to vector<1x256xi32>
    %323 = arith.addi %2, %322 : vector<1x256xi32>
    %c256_i32_89 = arith.constant 256 : i32
    %324 = vector.broadcast %c256_i32_89 : i32 to vector<1x256xi32>
    %325 = arith.cmpi slt, %323, %324 : vector<1x256xi32>
    %326 = arith.andi %321, %325 : vector<1x256xi1>
    %327 = arith.extui %326 : vector<1x256xi1> to vector<1x256xi32>
    %328 = arith.sitofp %327 : vector<1x256xi32> to vector<1x256xf32>
    %329 = vector.broadcast %328 : vector<1x256xf32> to vector<8x256xf32>
    %330 = arith.mulf %307, %329 : vector<8x256xf32>
    %331 = tpu.concatenate %44, %70, %96, %122, %148, %174, %1, %200, %226, %252, %278, %304, %330 in 0 : vector<8x256xf32>, vector<8x256xf32>, vector<8x256xf32>, vector<8x256xf32>, vector<8x256xf32>, vector<8x256xf32>, vector<8x256xf32>, vector<8x256xf32>, vector<8x256xf32>, vector<8x256xf32>, vector<8x256xf32>, vector<8x256xf32>, vector<8x256xf32> -> vector<104x256xf32>
    %c0_90 = arith.constant 0 : index
    %c0_91 = arith.constant 0 : index
    %332 = vector.load %arg2[%c0_90, %c0_91] : memref<8x104xf32, #tpu.memory_space<vmem>>, vector<8x104xf32>
    %cst = arith.constant dense<0.000000e+00> : vector<8x256xf32>
    %333 = tpu.matmul %332, %331, %cst {dimension_numbers = #tpu.dot_dimension_numbers<[1], [0], [0], [1], [0, 0, 1, 1], [], []>} : vector<8x104xf32>, vector<104x256xf32>, vector<8x256xf32> -> vector<8x256xf32>
    %c0_92 = arith.constant 0 : index
    %c0_93 = arith.constant 0 : index
    %334 = vector.load %arg3[%c0_92, %c0_93] : memref<8x1xf32, #tpu.memory_space<vmem>>, vector<8x1xf32>
    %335 = vector.broadcast %334 : vector<8x1xf32> to vector<8x256xf32>
    %336 = arith.addf %333, %335 : vector<8x256xf32>
    %c0_94 = arith.constant 0 : index
    %c0_95 = arith.constant 0 : index
    %c0_96 = arith.constant 0 : index
    %337 = vector.load %arg4[%c0_94, %c0_95, %c0_96] : memref<1x8x256xf32, #tpu.memory_space<vmem>>, vector<1x8x256xf32>
    %338 = vector.shape_cast %337 : vector<1x8x256xf32> to vector<8x256xf32>
    %339 = vector.shape_cast %336 : vector<8x256xf32> to vector<1x8x256xf32>
    tpu.vector_store %arg4[%c0_94, %c0_95, %c0_96], %339 {strides = array<i32>} : memref<1x8x256xf32, #tpu.memory_space<vmem>>, vector<1x8x256xf32>,
    return
  }
  func.func @transform_0(%arg0: i32) -> (i32, i32, i32) {
    %c0_i32 = arith.constant 0 : i32
    %c0_i32_0 = arith.constant 0 : i32
    %c0_i32_1 = arith.constant 0 : i32
    return %arg0, %c0_i32, %c0_i32_0 : i32, i32, i32
  }
  func.func @transform_1(%arg0: i32) -> (i32, i32) {
    %c0_i32 = arith.constant 0 : i32
    %c0_i32_0 = arith.constant 0 : i32
    %c0_i32_1 = arith.constant 0 : i32
    return %c0_i32, %c0_i32_0 : i32, i32
  }
  func.func @transform_2(%arg0: i32) -> (i32, i32) {
    %c0_i32 = arith.constant 0 : i32
    %c0_i32_0 = arith.constant 0 : i32
    %c0_i32_1 = arith.constant 0 : i32
    return %c0_i32, %c0_i32_0 : i32, i32
  }
  func.func @transform_3(%arg0: i32) -> (i32, i32, i32) {
    %c0_i32 = arith.constant 0 : i32
    %c0_i32_0 = arith.constant 0 : i32
    %c0_i32_1 = arith.constant 0 : i32
    return %arg0, %c0_i32, %c0_i32_0 : i32, i32, i32
  }
}

</mosaic_0001>

<llo_original>
// kernel: tpu_custom_call.1
$region0: #{tpu_custom_call.1}
  #allocation0 [shape = 'u32[]', space=smem, size = 0x4, offset = 0x4, fixed_abs, tag = 'smem constant byte address 0x4 - core index']
  #allocation1 [shape = 'u32[144,128]{1,0:T(1,128)}', space=vmem, size = 0x12000, scoped, tag = 'internal scratch']
  %s0 = inlined_call_operand.hbm [shape: f32[2,8,256], index: 0, kind: input, shape index: {}]
  %s1 = inlined_call_operand.hbm [shape: f32[8,104], index: 1, kind: input, shape index: {}]
  %s2 = inlined_call_operand.hbm [shape: f32[8,1], index: 2, kind: input, shape index: {}]
  %s3 = inlined_call_operand.hbm [shape: f32[2,8,256], index: 3, kind: output, shape index: {}]
  %s4 = sld [smem:[#allocation0]]
  $region57: #{tpu_custom_call.1} parent=0
    _
  %s6 = ssub.s32 1, %s4
  %s7 = scalar_select 0, %s6, %s4
  $region1: #{tpu_custom_call.1} parent=0
    #allocation2 [shape = 'u8[16384]{0}', space=vmem, size = 0x4000, scoped, tag = 'input window, operand 0']
    #allocation3 [shape = 's32[2]{0}', space=sflag, size = 0x8, scoped, tag = 'scoped memory for tpu_custom_call.1']
    #allocation4 [shape = 's32[2]{0}', space=sflag, size = 0x8, scoped, tag = 'scoped memory for tpu_custom_call.1']
    #allocation5 [shape = 'u8[4096]{0}', space=vmem, size = 0x1000, scoped, tag = 'input window, operand 1, single buffered']
    #allocation6 [shape = 's32[1]{0}', space=sflag, size = 0x4, scoped, tag = 'scoped memory for tpu_custom_call.1']
    #allocation7 [shape = 'u8[4096]{0}', space=vmem, size = 0x1000, scoped, tag = 'input window, operand 2, single buffered']
    #allocation8 [shape = 'u8[16384]{0}', space=vmem, size = 0x4000, scoped, tag = 'output window, operand 0']
    %8 = vsyncpa [#allocation3], 0
    %s9 = scalar_lea.sflag [#allocation3], 1
    %10 = vsyncpa %s9, 0
    %11 = vsyncpa [#allocation6], 0
    %12 = vsyncpa [#allocation4], 0
    %s13 = scalar_lea.sflag [#allocation4], 1
    %14 = vsyncpa %s13, 0
    loop: start=0, step=1, limit=4
    $region2: #{tpu_custom_call.1} parent=1 // loop_pre_header
      _
    $region3: #{tpu_custom_call.1} parent=1 // loop_header
      %s16 = sphi 0, %s20
      %p17 = scmp.ge.s32.totalorder %s16, 4
      %s26 = sphi 0, %s28
      %s29 = sphi 0, %s26
      %s30 = sphi 0, %s29
      %s46 = sphi 0, %s30
      %s50 = sphi 0, %s50
      %s52 = sphi 0, %s50
      %s53 = sphi 0, %s52
      %s67 = sphi 0, %s53
      %s71 = sphi 0, %s71
      %s73 = sphi 0, %s71
      %s74 = sphi 0, %s73
      %s88 = sphi 0, %s74
      %s94 = sphi 0, %s96
      %s97 = sphi 0, %s94
      %s98 = sphi 0, %s97
      %s114 = sphi 0, %s98
    $region4: #{tpu_custom_call.1} parent=1 // loop_header_branch
      %19 = sbr.rel (%p17) target = $region8
    $region5: #{tpu_custom_call.1} parent=1 // loop_body
      %s21 = ssub.s32 %s16, 1
      %s22 = ssub.s32 %s16, 2
      %s23 = sadd.s32 %s16, 1
      %s24 = ssub.s32 %s16, %s23
      %p25 = scmp.eq.s32.totalorder %s24, 0
      %s27 = sadd.s32 %s26, 1
      %s28 = scalar_select %p25, %s26, %s27
      %p31 = pneg %p25
      %p32 = scmp.eq.s32.totalorder %s16, 1
      %p33 = por %p31, %p32
      %p34 = scmp.ne.s32.totalorder %s26, %s29
      %p35 = scmp.eq.s32.totalorder %s16, 0
      %p36 = por %p34, %p35
      %p37 = scmp.ne.s32.totalorder %s26, %s29
      %p38 = scmp.eq.s32.totalorder %s21, 1
      %p39 = por %p37, %p38
      %p40 = scmp.ne.s32.totalorder %s29, %s30
      %p41 = scmp.eq.s32.totalorder %s21, 0
      %p42 = por %p40, %p41
      %p43 = scmp.ne.s32.totalorder %s29, %s30
      %p44 = scmp.eq.s32.totalorder %s22, 1
      %p45 = por %p43, %p44
      %p47 = scmp.ne.s32.totalorder %s30, %s46
      %p48 = scmp.eq.s32.totalorder %s22, 0
      %p49 = por %p47, %p48
      %s51 = sadd.s32 %s50, 1
      %p54 = scmp.eq.s32.totalorder %s16, 1
      %p55 = scmp.ne.s32.totalorder %s50, %s52
      %p56 = scmp.eq.s32.totalorder %s16, 0
      %p57 = por %p55, %p56
      %p58 = scmp.ne.s32.totalorder %s50, %s52
      %p59 = scmp.eq.s32.totalorder %s21, 1
      %p60 = por %p58, %p59
      %p61 = scmp.ne.s32.totalorder %s52, %s53
      %p62 = scmp.eq.s32.totalorder %s21, 0
      %p63 = por %p61, %p62
      %p64 = scmp.ne.s32.totalorder %s52, %s53
      %p65 = scmp.eq.s32.totalorder %s22, 1
      %p66 = por %p64, %p65
      %p68 = scmp.ne.s32.totalorder %s53, %s67
      %p69 = scmp.eq.s32.totalorder %s22, 0
      %p70 = por %p68, %p69
      %s72 = sadd.s32 %s71, 1
      %p75 = scmp.eq.s32.totalorder %s16, 1
      %p76 = scmp.ne.s32.totalorder %s71, %s73
      %p77 = scmp.eq.s32.totalorder %s16, 0
      %p78 = por %p76, %p77
      %p79 = scmp.ne.s32.totalorder %s71, %s73
      %p80 = scmp.eq.s32.totalorder %s21, 1
      %p81 = por %p79, %p80
      %p82 = scmp.ne.s32.totalorder %s73, %s74
      %p83 = scmp.eq.s32.totalorder %s21, 0
      %p84 = por %p82, %p83
      %p85 = scmp.ne.s32.totalorder %s73, %s74
      %p86 = scmp.eq.s32.totalorder %s22, 1
      %p87 = por %p85, %p86
      %p89 = scmp.ne.s32.totalorder %s74, %s88
      %p90 = scmp.eq.s32.totalorder %s22, 0
      %p91 = por %p89, %p90
      %s92 = ssub.s32 %s16, %s23
      %p93 = scmp.eq.s32.totalorder %s92, 0
      %s95 = sadd.s32 %s94, 1
      %s96 = scalar_select %p93, %s94, %s95
      %p99 = pneg %p93
      %p100 = scmp.eq.s32.totalorder %s16, 1
      %p101 = por %p99, %p100
      %p102 = scmp.ne.s32.totalorder %s94, %s97
      %p103 = scmp.eq.s32.totalorder %s16, 0
      %p104 = por %p102, %p103
      %p105 = scmp.ne.s32.totalorder %s94, %s97
      %p106 = scmp.eq.s32.totalorder %s21, 1
      %p107 = por %p105, %p106
      %p108 = scmp.ne.s32.totalorder %s97, %s98
      %p109 = scmp.eq.s32.totalorder %s21, 0
      %p110 = por %p108, %p109
      %p111 = scmp.ne.s32.totalorder %s97, %s98
      %p112 = scmp.eq.s32.totalorder %s22, 1
      %p113 = por %p111, %p112
      %p115 = scmp.ne.s32.totalorder %s98, %s114
      %p116 = scmp.eq.s32.totalorder %s22, 0
      %p117 = por %p115, %p116
      %p118 = scmp.le.s32.totalorder 1, %s16
      %p119 = scmp.lt.s32.totalorder %s16, 3
      %p120 = pnand %p118, %p119
      %p121 = pneg %p120
      // Predicated region
      $region9: #{tpu_custom_call.1} parent=5 // pred_check
        _
      $region10: #{tpu_custom_call.1} parent=5 // pred_check_branch
        %123 = sbr.rel (%p120) target = $region12
      $region11: #{tpu_custom_call.1} parent=5 // pred_region
        %s124 = ssub.s32 %s16, 1
        // Predicated region
        $region13: #{tpu_custom_call.1} parent=11 // pred_check
          %p125 = pneg %p63
        $region14: #{tpu_custom_call.1} parent=11 // pred_check_branch
          %127 = sbr.rel (%p125) target = $region16
        $region15: #{tpu_custom_call.1} parent=11 // pred_region
          %s129 = ssub.s32 128, 128
          %130 = vsyncadd [#allocation6], %s129
          %s132 = sshll.u32 [#allocation5], 4
          %s133 = int_to_ptr.vmem [resolvable:$true] %s132
          %135 = dma.hbm_to_vmem [thread:$0]  %s1, 128, %s133, [#allocation6]
        $region16: #{tpu_custom_call.1} parent=11 // pred_fallthru
          _
        // Predicated region
        $region17: #{tpu_custom_call.1} parent=11 // pred_check
          %p136 = pneg %p84
        $region18: #{tpu_custom_call.1} parent=11 // pred_check_branch
          %138 = sbr.rel (%p136) target = $region20
        $region19: #{tpu_custom_call.1} parent=11 // pred_region
          %s140 = ssub.s32 128, 128
          %141 = vsyncadd [#allocation6], %s140
          %s143 = sshll.u32 [#allocation7], 4
          %s144 = int_to_ptr.vmem [resolvable:$true] %s143
          %146 = dma.hbm_to_vmem [thread:$0]  %s2, 128, %s144, [#allocation6]
        $region20: #{tpu_custom_call.1} parent=11 // pred_fallthru
          _
      $region12: #{tpu_custom_call.1} parent=5 // pred_fallthru
        _
      %p147 = scmp.lt.s32.totalorder %s16, 2
      // Predicated region
      $region21: #{tpu_custom_call.1} parent=5 // pred_check
        %p148 = pneg %p147
      $region22: #{tpu_custom_call.1} parent=5 // pred_check_branch
        %150 = sbr.rel (%p148) target = $region24
      $region23: #{tpu_custom_call.1} parent=5 // pred_region
        // Predicated region
        $region25: #{tpu_custom_call.1} parent=23 // pred_check
          %p151 = pneg %p36
        $region26: #{tpu_custom_call.1} parent=23 // pred_check_branch
          %153 = sbr.rel (%p151) target = $region28
        $region27: #{tpu_custom_call.1} parent=23 // pred_region
          %s154 = sand.u32 %s26, 1
          %s155 = scalar_lea.sflag [#allocation3], %s154
          %s156 = sand.u32 %s26, 1
          %s157 = smul.addr %s156, 16
          %s158 = scalar_lea.vmem [#allocation2], %s157
          %s160 = ssub.s32 256, 256
          %161 = vsyncadd %s155, %s160
          %s162 = smul.addr %s16, 2
          %s163 = smul.addr %s162, 128
          %s164 = scalar_lea.hbm %s0, %s163
          %s166 = sshll.u32 %s158, 4
          %s167 = int_to_ptr.vmem [resolvable:$true] %s166
          %169 = dma.hbm_to_vmem [thread:$0]  %s164, 256, %s167, %s155
        $region28: #{tpu_custom_call.1} parent=23 // pred_fallthru
          _
      $region24: #{tpu_custom_call.1} parent=5 // pred_fallthru
        _
      %p170 = scmp.le.s32.totalorder 1, %s16
      %p171 = scmp.lt.s32.totalorder %s16, 3
      %p172 = pnand %p170, %p171
      %p173 = pneg %p172
      // Predicated region
      $region29: #{tpu_custom_call.1} parent=5 // pred_check
        _
      $region30: #{tpu_custom_call.1} parent=5 // pred_check_branch
        %175 = sbr.rel (%p172) target = $region32
      $region31: #{tpu_custom_call.1} parent=5 // pred_region
        %s176 = ssub.s32 %s16, 1
        %s177 = sand.u32 %s29, 1
        %s178 = scalar_lea.sflag [#allocation3], %s177
        %s179 = sand.u32 %s29, 1
        %s180 = smul.addr %s179, 16
        %s181 = scalar_lea.vmem [#allocation2], %s180
        // Predicated region
        $region33: #{tpu_custom_call.1} parent=31 // pred_check
          %p182 = pneg %p42
        $region34: #{tpu_custom_call.1} parent=31 // pred_check_branch
          %184 = sbr.rel (%p182) target = $region36
        $region35: #{tpu_custom_call.1} parent=31 // pred_region
          %185 = dma.done %s178, 256
        $region36: #{tpu_custom_call.1} parent=31 // pred_fallthru
          _
        // Predicated region
        $region37: #{tpu_custom_call.1} parent=31 // pred_check
          %p186 = pneg %p63
        $region38: #{tpu_custom_call.1} parent=31 // pred_check_branch
          %188 = sbr.rel (%p186) target = $region40
        $region39: #{tpu_custom_call.1} parent=31 // pred_region
          %189 = dma.done [#allocation6], 128
        $region40: #{tpu_custom_call.1} parent=31 // pred_fallthru
          _
        // Predicated region
        $region41: #{tpu_custom_call.1} parent=31 // pred_check
          %p190 = pneg %p84
        $region42: #{tpu_custom_call.1} parent=31 // pred_check_branch
          %192 = sbr.rel (%p190) target = $region44
        $region43: #{tpu_custom_call.1} parent=31 // pred_region
          %193 = dma.done [#allocation6], 128
        $region44: #{tpu_custom_call.1} parent=31 // pred_fallthru
          _
        %s194 = sand.u32 %s29, 1
        %s195 = scalar_lea.sflag [#allocation3], %s194
        %s196 = sand.u32 %s29, 1
        %s197 = smul.addr %s196, 16
        %s198 = scalar_lea.vmem [#allocation2], %s197
        %p199 = pneg %p42
        %p200 = pneg %p39
        %p201 = pneg %p63
        %p202 = pneg %p60
        %p203 = pneg %p84
        %p204 = pneg %p81
        %p205 = pneg %p110
        %p206 = pneg %p107
        %s207 = sand.u32 %s97, 1
        %s208 = scalar_lea.sflag [#allocation4], %s207
        %s209 = sand.u32 %s97, 1
        %s210 = smul.addr %s209, 16
        %s211 = scalar_lea.vmem [#allocation8], %s210
        %v212 = vld [vmem:[%s181] sm:$0xff]
        %v213 = vld [vmem:[%s181 + $0x8] sm:$0xff]
        %v214 = vlaneseq
        %v215 = vand.u32 %v214, 127
        %v216 = vadd.s32 %v215, 128
        %vm217 = vcmp.lt.s32.totalorder %v215, 0
        %v218 = vsub.s32 0, %v215
        %v219 = vsel %vm217, %v218, %v215
        %v220 = vshrl.u32 %v219, 4
        %v221 = vand.u32 %v219, 15
        %v222 = vsub.s32 0, %v221
        %v223 = vsel %vm217, %v222, %v221
        %vm224 = vcmp.lt.s32.totalorder %v216, 0
        %v225 = vsub.s32 0, %v216
        %v226 = vsel %vm224, %v225, %v216
        %v227 = vshrl.u32 %v226, 4
        %v228 = vand.u32 %v226, 15
        %v229 = vsub.s32 0, %v228
        %v230 = vsel %vm224, %v229, %v228
        %vm231 = vcmp.ne.s32.totalorder %v223, 0
        %vm232 = vcmp.ne.s32.totalorder %v230, 0
        %vm233 = vcmp.lt.s32.totalorder %v223, 0
        %vm234 = vcmp.lt.s32.totalorder %v230, 0
        %vm235 = vmand %vm233, %vm231
        %vm236 = vmand %vm234, %vm232
        %v237 = vadd.s32 %v223, 16
        %v238 = vadd.s32 %v230, 16
        %v239 = vsel %vm235, %v237, %v223
        %v240 = vsel %vm236, %v238, %v230
        %242 = vrot.lane.b32.xlu0 %v213, 48
        %v243 = vpop.permute.xlu0 %242
        %246 = vrot.lane.b32.xlu0 %v212, 48
        %v247 = vpop.permute.xlu0 %246
        %vm248 = vcmask 392192
        %v249 = vsel %vm248, %v247, %v243
        %v252 = vsel %vm248, %v243, %v247
        %vm253 = vcmp.ge.s32.totalorder %v239, 0
        %vm254 = vcmp.ge.s32.totalorder %v240, 0
        %vm255 = vcmp.lt.s32.totalorder %v239, 16
        %vm256 = vcmp.lt.s32.totalorder %v240, 16
        %vm257 = vmand %vm253, %vm255
        %vm258 = vmand %vm254, %vm256
        %v259 = vadd.s32 %v215, 4294967248
        %v260 = vadd.s32 %v216, 4294967248
        %vm261 = vcmp.ge.s32.totalorder %v259, 0
        %vm262 = vcmp.ge.s32.totalorder %v260, 0
        %vm263 = vmand %vm257, %vm261
        %vm264 = vmand %vm258, %vm262
        %vm265 = vcmp.lt.s32.totalorder %v259, 256
        %vm266 = vcmp.lt.s32.totalorder %v260, 256
        %vm267 = vmand %vm263, %vm265
        %vm268 = vmand %vm264, %vm266
        %v269 = vsel %vm267, 1, 0
        %v270 = vsel %vm268, 1, 0
        %v271 = vcvt.s32.f32 %v269
        %v272 = vcvt.s32.f32 %v270
        %v273 = vmul.f32 %v252, %v271
        %v274 = vmul.f32 %v249, %v272
        %275 = vrot.lane.b32.xlu0 %v213, 32
        %v276 = vpop.permute.xlu0 %275
        %278 = vrot.lane.b32.xlu0 %v212, 32
        %v279 = vpop.permute.xlu0 %278
        %vm280 = vcmask 261120
        %v281 = vsel %vm280, %v279, %v276
        %v284 = vsel %vm280, %v276, %v279
        %v285 = vadd.s32 %v215, 4294967264
        %v286 = vadd.s32 %v216, 4294967264
        %vm287 = vcmp.ge.s32.totalorder %v285, 0
        %vm288 = vcmp.ge.s32.totalorder %v286, 0
        %vm289 = vmand %vm257, %vm287
        %vm290 = vmand %vm258, %vm288
        %vm291 = vcmp.lt.s32.totalorder %v285, 256
        %vm292 = vcmp.lt.s32.totalorder %v286, 256
        %vm293 = vmand %vm289, %vm291
        %vm294 = vmand %vm290, %vm292
        %v295 = vsel %vm293, 1, 0
        %v296 = vsel %vm294, 1, 0
        %v297 = vcvt.s32.f32 %v295
        %v298 = vcvt.s32.f32 %v296
        %v299 = vmul.f32 %v284, %v297
        %v300 = vmul.f32 %v281, %v298
        %301 = vrot.lane.b32.xlu0 %v213, 16
        %v302 = vpop.permute.xlu0 %301
        %304 = vrot.lane.b32.xlu0 %v212, 16
        %v305 = vpop.permute.xlu0 %304
        %vm306 = vcmask 130048
        %v307 = vsel %vm306, %v305, %v302
        %v310 = vsel %vm306, %v302, %v305
        %v311 = vadd.s32 %v215, 4294967280
        %v312 = vadd.s32 %v216, 4294967280
        %vm313 = vcmp.ge.s32.totalorder %v311, 0
        %vm314 = vcmp.ge.s32.totalorder %v312, 0
        %vm315 = vmand %vm257, %vm313
        %vm316 = vmand %vm258, %vm314
        %vm317 = vcmp.lt.s32.totalorder %v311, 256
        %vm318 = vcmp.lt.s32.totalorder %v312, 256
        %vm319 = vmand %vm315, %vm317
        %vm320 = vmand %vm316, %vm318
        %v321 = vsel %vm319, 1, 0
        %v322 = vsel %vm320, 1, 0
        %v323 = vcvt.s32.f32 %v321
        %v324 = vcvt.s32.f32 %v322
        %v325 = vmul.f32 %v310, %v323
        %v326 = vmul.f32 %v307, %v324
        %327 = vrot.lane.b32.xlu0 %v213, 3
        %v328 = vpop.permute.xlu0 %327
        %330 = vrot.lane.b32.xlu0 %v212, 3
        %v331 = vpop.permute.xlu0 %330
        %vm332 = vcmask 23552
        %v333 = vsel %vm332, %v331, %v328
        %v336 = vsel %vm332, %v328, %v331
        %v337 = vadd.s32 %v239, 4294967293
        %v338 = vadd.s32 %v240, 4294967293
        %vm339 = vcmp.ge.s32.totalorder %v337, 0
        %vm340 = vcmp.ge.s32.totalorder %v338, 0
        %vm341 = vcmp.lt.s32.totalorder %v337, 16
        %vm342 = vcmp.lt.s32.totalorder %v338, 16
        %vm343 = vmand %vm339, %vm341
        %vm344 = vmand %vm340, %vm342
        %vm345 = vcmp.ge.s32.totalorder %v215, 0
        %vm346 = vcmp.ge.s32.totalorder %v216, 0
        %vm347 = vmand %vm343, %vm345
        %vm348 = vmand %vm344, %vm346
        %vm349 = vcmp.lt.s32.totalorder %v215, 256
        %vm350 = vcmp.lt.s32.totalorder %v216, 256
        %vm351 = vmand %vm347, %vm349
        %vm352 = vmand %vm348, %vm350
        %v353 = vsel %vm351, 1, 0
        %v354 = vsel %vm352, 1, 0
        %v355 = vcvt.s32.f32 %v353
        %v356 = vcvt.s32.f32 %v354
        %v357 = vmul.f32 %v336, %v355
        %v358 = vmul.f32 %v333, %v356
        %359 = vrot.lane.b32.xlu0 %v213, 2
        %v360 = vpop.permute.xlu0 %359
        %362 = vrot.lane.b32.xlu0 %v212, 2
        %v363 = vpop.permute.xlu0 %362
        %vm364 = vcmask 15360
        %v365 = vsel %vm364, %v363, %v360
        %v368 = vsel %vm364, %v360, %v363
        %v369 = vadd.s32 %v239, 4294967294
        %v370 = vadd.s32 %v240, 4294967294
        %vm371 = vcmp.ge.s32.totalorder %v369, 0
        %vm372 = vcmp.ge.s32.totalorder %v370, 0
        %vm373 = vcmp.lt.s32.totalorder %v369, 16
        %vm374 = vcmp.lt.s32.totalorder %v370, 16
        %vm375 = vmand %vm371, %vm373
        %vm376 = vmand %vm372, %vm374
        %vm377 = vmand %vm375, %vm345
        %vm378 = vmand %vm376, %vm346
        %vm379 = vmand %vm377, %vm349
        %vm380 = vmand %vm378, %vm350
        %v381 = vsel %vm379, 1, 0
        %v382 = vsel %vm380, 1, 0
        %v383 = vcvt.s32.f32 %v381
        %v384 = vcvt.s32.f32 %v382
        %v385 = vmul.f32 %v368, %v383
        %v386 = vmul.f32 %v365, %v384
        %387 = vrot.lane.b32.xlu0 %v213, 1
        %v388 = vpop.permute.xlu0 %387
        %390 = vrot.lane.b32.xlu0 %v212, 1
        %v391 = vpop.permute.xlu0 %390
        %vm392 = vcmask 7168
        %v393 = vsel %vm392, %v391, %v388
        %v396 = vsel %vm392, %v388, %v391
        %v397 = vadd.s32 %v239, 4294967295
        %v398 = vadd.s32 %v240, 4294967295
        %vm399 = vcmp.ge.s32.totalorder %v397, 0
        %vm400 = vcmp.ge.s32.totalorder %v398, 0
        %vm401 = vcmp.lt.s32.totalorder %v397, 16
        %vm402 = vcmp.lt.s32.totalorder %v398, 16
        %vm403 = vmand %vm399, %vm401
        %vm404 = vmand %vm400, %vm402
        %vm405 = vmand %vm403, %vm345
        %vm406 = vmand %vm404, %vm346
        %vm407 = vmand %vm405, %vm349
        %vm408 = vmand %vm406, %vm350
        %v409 = vsel %vm407, 1, 0
        %v410 = vsel %vm408, 1, 0
        %v411 = vcvt.s32.f32 %v409
        %v412 = vcvt.s32.f32 %v410
        %v413 = vmul.f32 %v396, %v411
        %v414 = vmul.f32 %v393, %v412
        %415 = vrot.lane.b32.xlu0 %v212, 127
        %v416 = vpop.permute.xlu0 %415
        %417 = vrot.lane.b32.xlu0 %v213, 127
        %v418 = vpop.permute.xlu0 %417
        %vm419 = vcmask 1039360
        %v420 = vsel %vm419, %v416, %v418
        %v424 = vsel %vm419, %v418, %v416
        %v425 = vadd.s32 %v239, 1
        %v426 = vadd.s32 %v240, 1
        %vm427 = vcmp.ge.s32.totalorder %v425, 0
        %vm428 = vcmp.ge.s32.totalorder %v426, 0
        %vm429 = vcmp.lt.s32.totalorder %v425, 16
        %vm430 = vcmp.lt.s32.totalorder %v426, 16
        %vm431 = vmand %vm427, %vm429
        %vm432 = vmand %vm428, %vm430
        %vm433 = vmand %vm431, %vm345
        %vm434 = vmand %vm432, %vm346
        %vm435 = vmand %vm433, %vm349
        %vm436 = vmand %vm434, %vm350
        %v437 = vsel %vm435, 1, 0
        %v438 = vsel %vm436, 1, 0
        %v439 = vcvt.s32.f32 %v437
        %v440 = vcvt.s32.f32 %v438
        %v441 = vmul.f32 %v420, %v439
        %v442 = vmul.f32 %v424, %v440
        %443 = vrot.lane.b32.xlu0 %v212, 126
        %v444 = vpop.permute.xlu0 %443
        %445 = vrot.lane.b32.xlu0 %v213, 126
        %v446 = vpop.permute.xlu0 %445
        %vm447 = vcmask 1031168
        %v448 = vsel %vm447, %v444, %v446
        %v452 = vsel %vm447, %v446, %v444
        %v453 = vadd.s32 %v239, 2
        %v454 = vadd.s32 %v240, 2
        %vm455 = vcmp.ge.s32.totalorder %v453, 0
        %vm456 = vcmp.ge.s32.totalorder %v454, 0
        %vm457 = vcmp.lt.s32.totalorder %v453, 16
        %vm458 = vcmp.lt.s32.totalorder %v454, 16
        %vm459 = vmand %vm455, %vm457
        %vm460 = vmand %vm456, %vm458
        %vm461 = vmand %vm459, %vm345
        %vm462 = vmand %vm460, %vm346
        %vm463 = vmand %vm461, %vm349
        %vm464 = vmand %vm462, %vm350
        %v465 = vsel %vm463, 1, 0
        %v466 = vsel %vm464, 1, 0
        %v467 = vcvt.s32.f32 %v465
        %v468 = vcvt.s32.f32 %v466
        %v469 = vmul.f32 %v448, %v467
        %v470 = vmul.f32 %v452, %v468
        %471 = vrot.lane.b32.xlu0 %v212, 125
        %v472 = vpop.permute.xlu0 %471
        %473 = vrot.lane.b32.xlu0 %v213, 125
        %v474 = vpop.permute.xlu0 %473
        %vm475 = vcmask 1022976
        %v476 = vsel %vm475, %v472, %v474
        %v480 = vsel %vm475, %v474, %v472
        %v481 = vadd.s32 %v239, 3
        %v482 = vadd.s32 %v240, 3
        %vm483 = vcmp.ge.s32.totalorder %v481, 0
        %vm484 = vcmp.ge.s32.totalorder %v482, 0
        %vm485 = vcmp.lt.s32.totalorder %v481, 16
        %vm486 = vcmp.lt.s32.totalorder %v482, 16
        %vm487 = vmand %vm483, %vm485
        %vm488 = vmand %vm484, %vm486
        %vm489 = vmand %vm487, %vm345
        %vm490 = vmand %vm488, %vm346
        %vm491 = vmand %vm489, %vm349
        %vm492 = vmand %vm490, %vm350
        %v493 = vsel %vm491, 1, 0
        %v494 = vsel %vm492, 1, 0
        %v495 = vcvt.s32.f32 %v493
        %v496 = vcvt.s32.f32 %v494
        %v497 = vmul.f32 %v476, %v495
        %v498 = vmul.f32 %v480, %v496
        %499 = vrot.lane.b32.xlu0 %v212, 112
        %v500 = vpop.permute.xlu0 %499
        %501 = vrot.lane.b32.xlu0 %v213, 112
        %v502 = vpop.permute.xlu0 %501
        %vm503 = vcmask 916480
        %v504 = vsel %vm503, %v500, %v502
        %v508 = vsel %vm503, %v502, %v500
        %v509 = vadd.s32 %v215, 16
        %v510 = vadd.s32 %v216, 16
        %vm511 = vcmp.ge.s32.totalorder %v509, 0
        %vm512 = vcmp.ge.s32.totalorder %v510, 0
        %vm513 = vmand %vm257, %vm511
        %vm514 = vmand %vm258, %vm512
        %vm515 = vcmp.lt.s32.totalorder %v509, 256
        %vm516 = vcmp.lt.s32.totalorder %v510, 256
        %vm517 = vmand %vm513, %vm515
        %vm518 = vmand %vm514, %vm516
        %v519 = vsel %vm517, 1, 0
        %v520 = vsel %vm518, 1, 0
        %v521 = vcvt.s32.f32 %v519
        %v522 = vcvt.s32.f32 %v520
        %v523 = vmul.f32 %v504, %v521
        %v524 = vmul.f32 %v508, %v522
        %525 = vrot.lane.b32.xlu0 %v212, 96
        %v526 = vpop.permute.xlu0 %525
        %527 = vrot.lane.b32.xlu0 %v213, 96
        %v528 = vpop.permute.xlu0 %527
        %vm529 = vcmask 785408
        %v530 = vsel %vm529, %v526, %v528
        %v534 = vsel %vm529, %v528, %v526
        %v535 = vadd.s32 %v215, 32
        %v536 = vadd.s32 %v216, 32
        %vm537 = vcmp.ge.s32.totalorder %v535, 0
        %vm538 = vcmp.ge.s32.totalorder %v536, 0
        %vm539 = vmand %vm257, %vm537
        %vm540 = vmand %vm258, %vm538
        %vm541 = vcmp.lt.s32.totalorder %v535, 256
        %vm542 = vcmp.lt.s32.totalorder %v536, 256
        %vm543 = vmand %vm539, %vm541
        %vm544 = vmand %vm540, %vm542
        %v545 = vsel %vm543, 1, 0
        %v546 = vsel %vm544, 1, 0
        %v547 = vcvt.s32.f32 %v545
        %v548 = vcvt.s32.f32 %v546
        %v549 = vmul.f32 %v530, %v547
        %v550 = vmul.f32 %v534, %v548
        %551 = vrot.lane.b32.xlu0 %v212, 80
        %v552 = vpop.permute.xlu0 %551
        %553 = vrot.lane.b32.xlu0 %v213, 80
        %v554 = vpop.permute.xlu0 %553
        %vm555 = vcmask 654336
        %v556 = vsel %vm555, %v552, %v554
        %v560 = vsel %vm555, %v554, %v552
        %v561 = vadd.s32 %v215, 48
        %v562 = vadd.s32 %v216, 48
        %vm563 = vcmp.ge.s32.totalorder %v561, 0
        %vm564 = vcmp.ge.s32.totalorder %v562, 0
        %vm565 = vmand %vm257, %vm563
        %vm566 = vmand %vm258, %vm564
        %vm567 = vcmp.lt.s32.totalorder %v561, 256
        %vm568 = vcmp.lt.s32.totalorder %v562, 256
        %vm569 = vmand %vm565, %vm567
        %vm570 = vmand %vm566, %vm568
        %v571 = vsel %vm569, 1, 0
        %v572 = vsel %vm570, 1, 0
        %v573 = vcvt.s32.f32 %v571
        %v574 = vcvt.s32.f32 %v572
        %v575 = vmul.f32 %v556, %v573
        %v576 = vmul.f32 %v560, %v574
        %v577 = vld [vmem:[#allocation5] sm:$0xff]
        %v578 = vld [vmem:[#allocation7] sm:$0xff]
        %580 = vset.pattern.permute.xlu0 0
        %581 = vperm.xlu0 %580, %v578
        %v582 = vpop.permute.xlu0 %581
        %vm584 = vcmask 850944
        %v586 = vsel %vm584, %v577, 0
        %588 = vmatprep.subr.mxu0 %v274
        %589 = vmatpush1.msra.mxu0 %v273
        %590 = vmatprep.subr.mxu0 %v300
        %591 = vmatpush1.msra.mxu0 %v299
        %592 = vmatprep.subr.mxu0 %v326
        %593 = vmatpush1.msra.mxu0 %v325
        %594 = vmatprep.subr.mxu0 %v358
        %595 = vmatpush1.msra.mxu0 %v357
        %596 = vmatprep.subr.mxu0 %v386
        %597 = vmatpush1.msra.mxu0 %v385
        %598 = vmatprep.subr.mxu0 %v414
        %599 = vmatpush1.msra.mxu0 %v413
        %600 = vmatprep.subr.mxu0 %v213
        %601 = vmatpush1.msra.mxu0 %v212
        %602 = vmatprep.subr.mxu0 %v442
        %603 = vmatpush1.msra.mxu0 %v441
        %604 = vmatprep.subr.mxu0 %v470
        %605 = vmatpush1.msra.mxu0 %v469
        %606 = vmatprep.subr.mxu0 %v498
        %607 = vmatpush1.msra.mxu0 %v497
        %608 = vmatprep.subr.mxu0 %v524
        %609 = vmatpush1.msra.mxu0 %v523
        %610 = vmatprep.subr.mxu0 %v550
        %611 = vmatpush1.msra.mxu0 %v549
        %612 = vmatprep.subr.mxu0 %v576
        %613 = vmatpush1.msra.mxu0 %v575
        %614 = vmatprep.subr.mxu0 0.0
        %615 = vmatpush1.msra.mxu0 0.0
        %616 = vmatprep.subr.mxu0 0.0
        %617 = vmatpush1.msra.mxu0 0.0
        %618 = vmatprep.subr.mxu0 0.0
        %619 = vmatpush1.msra.mxu0 0.0
        %620 = vmatprep.subr.mxu0 0.0
        %621 = vmatpush1.msra.mxu0 0.0
        %622 = vmatprep.subr.mxu0 0.0
        %623 = vmatpush1.msra.mxu0 0.0
        %624 = vmatprep.subr.mxu0 0.0
        %625 = vmatpush1.msra.mxu0 0.0
        %626 = vmatprep.subr.mxu0 0.0
        %627 = vmatpush1.msra.mxu0 0.0
        %628 = vmatprep.subr.mxu0 0.0
        %629 = vmatpush1.msra.mxu0 0.0
        %630 = vmatprep.subr.mxu0 0.0
        %631 = vmatpush1.msra.mxu0 0.0
        %632 = vmatprep.subr.mxu0 0.0
        %633 = vmatpush1.msra.mxu0 0.0
        %634 = vmatprep.subr.mxu0 0.0
        %635 = vmatpush1.msra.mxu0 0.0
        %636 = vmatprep.subr.mxu0 0.0
        %637 = vmatpush1.msra.mxu0 0.0
        %638 = vmatprep.subr.mxu0 0.0
        %639 = vmatpush1.msra.mxu0 0.0
        %640 = vmatprep.subr.mxu0 0.0
        %641 = vmatpush1.msra.mxu0 0.0
        %642 = vmatprep.subr.mxu0 0.0
        %643 = vmatpush1.msra.mxu0 0.0
        %644 = vmatprep.subr.mxu0 0.0
        %645 = vmatpush1.msra.mxu0 0.0
        %646 = vmatprep.subr.mxu0 0.0
        %647 = vmatpush1.msra.mxu0 0.0
        %648 = vmatprep.subr.mxu0 0.0
        %649 = vmatpush1.msra.mxu0 0.0
        %650 = vmatprep.subr.mxu0 0.0
        %651 = vmatpush1.msra.mxu0 0.0
        %652 = vmatprep.mubr.f32.mxu0 0.0
        %653 = vmatmul.mubr.f32.gmra.mrb[0].mxu0 %v586
        %v654 = vpop.f32.mrb[0].mxu0
        %v655 = vadd.f32 %v582, %v654
        %v656 = vpop.f32.mrb[0].mxu0
        %v657 = vadd.f32 %v582, %v656
        %658 = vdwg.mxu0
        %659 = vst [vmem:[%s211] sm:$0xff] %v655
        %660 = vst [vmem:[%s211 + $0x8] sm:$0xff] %v657
        %s661 = sand.u32 %s97, 1
        %s662 = scalar_lea.sflag [#allocation4], %s661
        %s663 = sand.u32 %s97, 1
        %s664 = smul.addr %s663, 16
        %s665 = scalar_lea.vmem [#allocation8], %s664
        // Predicated region
        $region45: #{tpu_custom_call.1} parent=31 // pred_check
          %p666 = pneg %p107
        $region46: #{tpu_custom_call.1} parent=31 // pred_check_branch
          %668 = sbr.rel (%p666) target = $region48
        $region47: #{tpu_custom_call.1} parent=31 // pred_region
          %s670 = ssub.s32 256, 256
          %671 = vsyncadd %s662, %s670
          %s672 = smul.addr %s21, 2
          %s673 = smul.addr %s672, 128
          %s674 = scalar_lea.hbm %s3, %s673
          %s676 = sshll.u32 %s665, 4
          %s677 = int_to_ptr.vmem [resolvable:$true] %s676
          %679 = dma.vmem_to_hbm [thread:$0]  %s677, 256, %s674, %s662
        $region48: #{tpu_custom_call.1} parent=31 // pred_fallthru
          _
      $region32: #{tpu_custom_call.1} parent=5 // pred_fallthru
        _
      %p680 = scmp.le.s32.totalorder 2, %s16
      // Predicated region
      $region49: #{tpu_custom_call.1} parent=5 // pred_check
        %p681 = pneg %p680
      $region50: #{tpu_custom_call.1} parent=5 // pred_check_branch
        %683 = sbr.rel (%p681) target = $region52
      $region51: #{tpu_custom_call.1} parent=5 // pred_region
        %s684 = ssub.s32 %s16, 2
        // Predicated region
        $region53: #{tpu_custom_call.1} parent=51 // pred_check
          %p685 = pneg %p113
        $region54: #{tpu_custom_call.1} parent=51 // pred_check_branch
          %687 = sbr.rel (%p685) target = $region56
        $region55: #{tpu_custom_call.1} parent=51 // pred_region
          %s688 = sand.u32 %s98, 1
          %s689 = scalar_lea.sflag [#allocation4], %s688
          %s690 = sand.u32 %s98, 1
          %s691 = smul.addr %s690, 16
          %s692 = scalar_lea.vmem [#allocation8], %s691
          %693 = dma.done %s689, 256
        $region56: #{tpu_custom_call.1} parent=51 // pred_fallthru
          _
      $region52: #{tpu_custom_call.1} parent=5 // pred_fallthru
        _
    $region6: #{tpu_custom_call.1} parent=1 // loop_footer
      %s20 = sadd.s32 1, %s16
    $region7: #{tpu_custom_call.1} parent=1 // loop_footer_branch
      %15 = sbr.rel target = $region3
    $region8: #{tpu_custom_call.1} parent=1 // loop_exit
      _
    %694 = vsyncpa [#allocation3], 1
    %s695 = scalar_lea.sflag [#allocation3], 1
    %696 = vsyncpa %s695, 1
    %697 = vsyncpa [#allocation6], 1
    %698 = vsyncpa [#allocation4], 1
    %s699 = scalar_lea.sflag [#allocation4], 1
    %700 = vsyncpa %s699, 1

</llo_original>
